<compile_context>
chip_gen: v5e
topology: v5e:2x2
jax: 0.10.0
libtpu: 0.0.40
codegen_flags: <defaults>
</compile_context>

<pallas_src>
import jax
import jax.numpy as jnp
from jax.experimental import pallas as pl
from jax.experimental.pallas import tpu as pltpu

SAMPLE_RATE = 16000
N_FFT = 128
HOP = 32
N_BINS = N_FFT // 2 + 1        # 65 real DFT bins
NB_PAD = 128                   # bins zero-padded to a full 128-lane register
SEMITONES = 2.0                # fixed transposition
P = 1.0                        # apply probability


# ---------------------------------------------------------------------------
# Pallas kernel: one lane-dense MXU matmul against a constant (windowed) basis
# ---------------------------------------------------------------------------
def _matmul_kernel(x_ref, basis_ref, out_ref):
    out_ref[...] = jnp.dot(x_ref[...], basis_ref[...],
                           preferred_element_type=jnp.float32)


def _pick_tm(rows):
    # Big row tiles (>=128) keep per-grid-step overhead negligible; cap so the grid still has
    # >=2 parallel steps for small inputs (v7x megacore) and VMEM stays tiny on all generations.
    if rows >= 1024:
        return 512
    if rows >= 512:
        return 256
    return 128


def _pad_rows(x, tm):
    r = x.shape[0]
    pad = (-r) % tm
    if pad:
        x = jnp.pad(x, ((0, pad), (0, 0)))
    return x, r


def _tiled_matmul(x, basis):
    """(rows, K) @ (K, N) with rows tiled over a 1-D parallel grid; K, N are multiples of 128."""
    kdim = x.shape[1]
    ncols = basis.shape[1]
    tm = _pick_tm(x.shape[0])
    xp, r = _pad_rows(x, tm)
    rp = xp.shape[0]
    out = pl.pallas_call(
        _matmul_kernel,
        out_shape=jax.ShapeDtypeStruct((rp, ncols), jnp.float32),
        grid=(rp // tm,),
        in_specs=[pl.BlockSpec((tm, kdim), lambda i: (i, 0)),
                  pl.BlockSpec((kdim, ncols), lambda i: (0, 0))],
        out_specs=pl.BlockSpec((tm, ncols), lambda i: (i, 0)),
        compiler_params=pltpu.CompilerParams(dimension_semantics=("parallel",)),
    )(xp, basis)
    return out[:r]


# ---------------------------------------------------------------------------
# Constant bases (Hann window folded in, bins padded to 128 lanes)
# ---------------------------------------------------------------------------
def _hann(n):
    return (0.5 - 0.5 * jnp.cos(2.0 * jnp.pi * jnp.arange(n) / n)).astype(jnp.float32)


def _stft_basis():
    n = jnp.arange(N_FFT, dtype=jnp.float32)[:, None]
    k = jnp.arange(N_BINS, dtype=jnp.float32)[None, :]
    ang = 2.0 * jnp.pi * n * k / N_FFT                     # (N_FFT, N_BINS)
    window = _hann(N_FFT)
    cr_w = window[:, None] * jnp.cos(ang)                  # analysis window folded in
    ci_w = window[:, None] * (-jnp.sin(ang))
    padc = NB_PAD - N_BINS
    return jnp.concatenate([jnp.pad(cr_w, ((0, 0), (0, padc))),
                            jnp.pad(ci_w, ((0, 0), (0, padc)))], axis=1)   # (128, 256)


def _istft_basis():
    n = jnp.arange(N_FFT, dtype=jnp.float32)[:, None]
    k = jnp.arange(N_BINS, dtype=jnp.float32)[None, :]
    ang = 2.0 * jnp.pi * n * k / N_FFT
    window = _hann(N_FFT)
    kk = jnp.arange(N_BINS)
    w = jnp.where((kk == 0) | (kk == N_FFT // 2), 1.0, 2.0).astype(jnp.float32)
    ar_w = (w[:, None] * jnp.cos(ang.T)) / N_FFT * window[None, :]   # synthesis window folded in
    ai_w = (-w[:, None] * jnp.sin(ang.T)) / N_FFT * window[None, :]
    padr = NB_PAD - N_BINS
    return jnp.concatenate([jnp.pad(ar_w, ((0, padr), (0, 0))),
                            jnp.pad(ai_w, ((0, padr), (0, 0)))], axis=0)   # (256, 128)


# ---------------------------------------------------------------------------
# Plain-JAX glue (framing, phase vocoder, overlap-add, resample)
# ---------------------------------------------------------------------------
def _frame_slices(xp):
    """Overlapping frames built from 4 shifted HOP-wide slices (no gather)."""
    B, L = xp.shape
    F = 1 + (L - N_FFT) // HOP
    nseg = N_FFT // HOP
    Lr = -(-L // HOP) * HOP
    if Lr != L:
        xp = jnp.pad(xp, ((0, 0), (0, Lr - L)))
    a = xp.reshape(B, Lr // HOP, HOP)
    parts = [a[:, j:j + F, :] for j in range(nseg)]
    return jnp.concatenate(parts, axis=-1)                 # (B, F, N_FFT)


def _phase_vocoder(re, im, rate):
    # Operates on the 128-lane padded spectra; padded bins are exactly zero and stay zero.
    B, F, K = re.shape
    phase_advance = jnp.pi * HOP * jnp.arange(K, dtype=jnp.float32) / (N_FFT // 2)
    t = jnp.arange(0, F, rate)        # rate is a Python float constant (see review note)
    t0 = jnp.floor(t).astype(jnp.int32)
    alpha = (t - t0)[None, :, None]
    re_p = jnp.pad(re, ((0, 0), (0, 2), (0, 0)))
    im_p = jnp.pad(im, ((0, 0), (0, 2), (0, 0)))
    r0, i0 = re_p[:, t0, :], im_p[:, t0, :]
    r1, i1 = re_p[:, t0 + 1, :], im_p[:, t0 + 1, :]
    ang0, ang1 = jnp.arctan2(i0, r0), jnp.arctan2(i1, r1)
    n0 = jnp.sqrt(r0 * r0 + i0 * i0)
    n1 = jnp.sqrt(r1 * r1 + i1 * i1)
    dphase = ang1 - ang0 - phase_advance[None, None, :]
    dphase = dphase - 2.0 * jnp.pi * jnp.round(dphase / (2.0 * jnp.pi))
    dphase = dphase + phase_advance[None, None, :]
    phase0 = jnp.arctan2(im[:, :1, :], re[:, :1, :])
    phase_acc = jnp.cumsum(jnp.concatenate([phase0, dphase[:, :-1, :]], axis=1), axis=1)
    mag = alpha * n1 + (1.0 - alpha) * n0
    return mag * jnp.cos(phase_acc), mag * jnp.sin(phase_acc)


def _overlap_add(frames):
    """Overlap-add via 4 static slice-adds instead of an XLA scatter."""
    B, F, N = frames.shape
    nseg = N // HOP
    G = F - 1 + nseg
    win2 = (_hann(N) ** 2).reshape(nseg, HOP)
    segs = jnp.zeros((B, G, HOP), jnp.float32)
    wseg = jnp.zeros((G, HOP), jnp.float32)
    for j in range(nseg):
        segs = segs.at[:, j:j + F, :].add(frames[:, :, j * HOP:(j + 1) * HOP])
        wseg = wseg.at[j:j + F, :].add(win2[j][None, :])
    return segs.reshape(B, G * HOP), wseg.reshape(1, G * HOP)


def _resample_linear(sig, factor, target_len):
    B, L = sig.shape
    pos = jnp.arange(target_len, dtype=jnp.float32) * factor
    pos = jnp.clip(pos, 0.0, L - 1.001)
    i0 = jnp.floor(pos).astype(jnp.int32)
    frac = pos - i0
    return sig[:, i0] * (1.0 - frac) + sig[:, i0 + 1] * frac


# ---------------------------------------------------------------------------
# Top level
# ---------------------------------------------------------------------------
def pitch_shift(x, semitones=SEMITONES):
    B, T = x.shape
    stft_basis = _stft_basis()                             # (N_FFT, 2*NB_PAD)
    istft_basis = _istft_basis()                           # (2*NB_PAD, N_FFT)

    pad = N_FFT // 2
    xp = jnp.pad(x, ((0, 0), (pad, pad)), mode="reflect")
    frames = _frame_slices(xp)                             # (B, F, N_FFT)
    F = frames.shape[1]

    spec = _tiled_matmul(frames.reshape(B * F, N_FFT), stft_basis)   # (B*F, 256)
    re = spec[:, :NB_PAD].reshape(B, F, NB_PAD)
    im = spec[:, NB_PAD:].reshape(B, F, NB_PAD)

    shift_ratio = 2.0 ** (semitones / 12.0)
    re_s, im_s = _phase_vocoder(re, im, rate=1.0 / shift_ratio)
    Fo = re_s.shape[1]

    spec_s = jnp.concatenate([re_s, im_s], axis=-1).reshape(B * Fo, 2 * NB_PAD)
    frames_t = _tiled_matmul(spec_s, istft_basis).reshape(B, Fo, N_FFT)

    sig, wsum = _overlap_add(frames_t)
    sig = sig / jnp.maximum(wsum, 1e-8)
    sig = sig[:, pad:(Fo - 1) * HOP + N_FFT - pad]         # stretched signal, length ~ T*ratio

    return _resample_linear(sig, shift_ratio, T)


def pitch_shift_forward(x, key, p=P):
    """Mirrors PitchShift.forward: (B, T) -> unsqueeze channel -> augment -> squeeze."""
    shifted = pitch_shift(x)
    apply_mask = jax.random.bernoulli(key, p, (x.shape[0],))
    return jnp.where(apply_mask[:, None], shifted, x).astype(x.dtype)


if __name__ == "__main__":
    key = jax.random.PRNGKey(0)
    kx, kp = jax.random.split(key)
    B, T = 2, 2048
    x = jax.random.normal(kx, (B, T), dtype=jnp.float32)
    out = jax.jit(pitch_shift_forward)(x, kp)
    out = jax.block_until_ready(out)
    assert out.shape == (B, T) and out.dtype == x.dtype
    assert bool(jnp.all(jnp.isfinite(out)))
    print("KERNEL_OK")
</pallas_src>

<mosaic_0001>
module attributes {stable_mosaic.version = 11 : i64} {
  func.func @_matmul_kernel(%arg0: i32, %arg1: memref<128x128xf32, #tpu.memory_space<vmem>>, %arg2: memref<128x256xf32, #tpu.memory_space<vmem>>, %arg3: memref<128x256xf32, #tpu.memory_space<vmem>>) attributes {dimension_semantics = [#tpu.dimension_semantics<parallel>], iteration_bounds = array<i64: 2>, scalar_prefetch = 0 : i64, scratch_operands = 0 : i64, tpu.core_type = #tpu.core_type<tc>, window_params = [{transform_indices = @transform_0, window_bounds = array<i64: 128, 128>}, {pipeline_mode = #tpu.pipeline_mode<synchronous>, transform_indices = @transform_1, window_bounds = array<i64: 128, 256>}, {transform_indices = @transform_2, window_bounds = array<i64: 128, 256>}]} {
    %c0 = arith.constant 0 : index
    %c0_0 = arith.constant 0 : index
    %0 = vector.load %arg1[%c0, %c0_0] : memref<128x128xf32, #tpu.memory_space<vmem>>, vector<128x128xf32>
    %c0_1 = arith.constant 0 : index
    %c0_2 = arith.constant 0 : index
    %1 = vector.load %arg2[%c0_1, %c0_2] : memref<128x256xf32, #tpu.memory_space<vmem>>, vector<128x256xf32>
    %cst = arith.constant dense<0.000000e+00> : vector<128x256xf32>
    %2 = tpu.matmul %0, %1, %cst {dimension_numbers = #tpu.dot_dimension_numbers<[1], [0], [0], [1], [0, 0, 1, 1], [], []>} : vector<128x128xf32>, vector<128x256xf32>, vector<128x256xf32> -> vector<128x256xf32>
    %c0_3 = arith.constant 0 : index
    %c0_4 = arith.constant 0 : index
    %3 = vector.load %arg3[%c0_3, %c0_4] : memref<128x256xf32, #tpu.memory_space<vmem>>, vector<128x256xf32>
    tpu.vector_store %arg3[%c0_3, %c0_4], %2 {strides = array<i32>} : memref<128x256xf32, #tpu.memory_space<vmem>>, vector<128x256xf32>,
    return
  }
  func.func @transform_0(%arg0: i32) -> (i32, i32) {
    %c0_i32 = arith.constant 0 : i32
    %c0_i32_0 = arith.constant 0 : i32
    return %arg0, %c0_i32 : i32, i32
  }
  func.func @transform_1(%arg0: i32) -> (i32, i32) {
    %c0_i32 = arith.constant 0 : i32
    %c0_i32_0 = arith.constant 0 : i32
    %c0_i32_1 = arith.constant 0 : i32
    return %c0_i32, %c0_i32_0 : i32, i32
  }
  func.func @transform_2(%arg0: i32) -> (i32, i32) {
    %c0_i32 = arith.constant 0 : i32
    %c0_i32_0 = arith.constant 0 : i32
    return %arg0, %c0_i32 : i32, i32
  }
}

module attributes {stable_mosaic.version = 11 : i64} {
  func.func @_matmul_kernel(%arg0: i32, %arg1: memref<128x256xf32, #tpu.memory_space<vmem>>, %arg2: memref<256x128xf32, #tpu.memory_space<vmem>>, %arg3: memref<128x128xf32, #tpu.memory_space<vmem>>) attributes {dimension_semantics = [#tpu.dimension_semantics<parallel>], iteration_bounds = array<i64: 2>, scalar_prefetch = 0 : i64, scratch_operands = 0 : i64, tpu.core_type = #tpu.core_type<tc>, window_params = [{transform_indices = @transform_0, window_bounds = array<i64: 128, 256>}, {pipeline_mode = #tpu.pipeline_mode<synchronous>, transform_indices = @transform_1, window_bounds = array<i64: 256, 128>}, {transform_indices = @transform_2, window_bounds = array<i64: 128, 128>}]} {
    %c0 = arith.constant 0 : index
    %c0_0 = arith.constant 0 : index
    %0 = vector.load %arg1[%c0, %c0_0] : memref<128x256xf32, #tpu.memory_space<vmem>>, vector<128x256xf32>
    %c0_1 = arith.constant 0 : index
    %c0_2 = arith.constant 0 : index
    %1 = vector.load %arg2[%c0_1, %c0_2] : memref<256x128xf32, #tpu.memory_space<vmem>>, vector<256x128xf32>
    %cst = arith.constant dense<0.000000e+00> : vector<128x128xf32>
    %2 = tpu.matmul %0, %1, %cst {dimension_numbers = #tpu.dot_dimension_numbers<[1], [0], [0], [1], [0, 0, 1, 1], [], []>} : vector<128x256xf32>, vector<256x128xf32>, vector<128x128xf32> -> vector<128x128xf32>
    %c0_3 = arith.constant 0 : index
    %c0_4 = arith.constant 0 : index
    %3 = vector.load %arg3[%c0_3, %c0_4] : memref<128x128xf32, #tpu.memory_space<vmem>>, vector<128x128xf32>
    tpu.vector_store %arg3[%c0_3, %c0_4], %2 {strides = array<i32>} : memref<128x128xf32, #tpu.memory_space<vmem>>, vector<128x128xf32>,
    return
  }
  func.func @transform_0(%arg0: i32) -> (i32, i32) {
    %c0_i32 = arith.constant 0 : i32
    %c0_i32_0 = arith.constant 0 : i32
    return %arg0, %c0_i32 : i32, i32
  }
  func.func @transform_1(%arg0: i32) -> (i32, i32) {
    %c0_i32 = arith.constant 0 : i32
    %c0_i32_0 = arith.constant 0 : i32
    %c0_i32_1 = arith.constant 0 : i32
    return %c0_i32, %c0_i32_0 : i32, i32
  }
  func.func @transform_2(%arg0: i32) -> (i32, i32) {
    %c0_i32 = arith.constant 0 : i32
    %c0_i32_0 = arith.constant 0 : i32
    return %arg0, %c0_i32 : i32, i32
  }
}

</mosaic_0001>

<llo_original>
// kernel: pitch_shift_forward.2
$region0: #{pitch_shift_forward.2}
  #allocation0 [shape = 'u32[]', space=smem, size = 0x4, offset = 0x4, fixed_abs, tag = 'smem constant byte address 0x4 - core index']
  #allocation1 [shape = 'u32[72,128]{1,0:T(1,128)}', space=vmem, size = 0x9000, scoped, tag = 'internal scratch']
  %s0 = inlined_call_operand.vmem [shape: f32[256,128], index: 0, kind: input, shape index: {}]
  %s1 = inlined_call_operand.vmem [shape: f32[128,256], index: 1, kind: input, shape index: {}]
  %s2 = inlined_call_operand.vmem [shape: f32[256,256], index: 2, kind: output, shape index: {}]
  %s3 = sld [smem:[#allocation0]]
  $region41: #{pitch_shift_forward.2} parent=0
    _
  %s5 = ssub.s32 1, %s3
  %s6 = scalar_select 0, %s5, %s3
  loop: start=0, step=1, limit=4
  $region2: #{pitch_shift_forward.2} parent=0 // loop_pre_header
    _
  $region3: #{pitch_shift_forward.2} parent=0 // loop_header
    %s8 = sphi 0, %s12
    %p9 = scmp.ge.s32.totalorder %s8, 4
    %s18 = sphi 0, %s20
    %s21 = sphi 0, %s18
    %s22 = sphi 0, %s21
    %s38 = sphi 0, %s22
    %s42 = sphi 0, %s42
    %s44 = sphi 0, %s42
    %s45 = sphi 0, %s44
    %s59 = sphi 0, %s45
    %s65 = sphi 0, %s67
    %s68 = sphi 0, %s65
    %s69 = sphi 0, %s68
    %s85 = sphi 0, %s69
  $region4: #{pitch_shift_forward.2} parent=0 // loop_header_branch
    %11 = sbr.rel (%p9) target = $region8
  $region5: #{pitch_shift_forward.2} parent=0 // loop_body
    %s13 = ssub.s32 %s8, 1
    %s14 = ssub.s32 %s8, 2
    %s15 = sadd.s32 %s8, 1
    %s16 = ssub.s32 %s8, %s15
    %p17 = scmp.eq.s32.totalorder %s16, 0
    %s19 = sadd.s32 %s18, 1
    %s20 = scalar_select %p17, %s18, %s19
    %p23 = pneg %p17
    %p24 = scmp.eq.s32.totalorder %s8, 1
    %p25 = por %p23, %p24
    %p26 = scmp.ne.s32.totalorder %s18, %s21
    %p27 = scmp.eq.s32.totalorder %s8, 0
    %p28 = por %p26, %p27
    %p29 = scmp.ne.s32.totalorder %s18, %s21
    %p30 = scmp.eq.s32.totalorder %s13, 1
    %p31 = por %p29, %p30
    %p32 = scmp.ne.s32.totalorder %s21, %s22
    %p33 = scmp.eq.s32.totalorder %s13, 0
    %p34 = por %p32, %p33
    %p35 = scmp.ne.s32.totalorder %s21, %s22
    %p36 = scmp.eq.s32.totalorder %s14, 1
    %p37 = por %p35, %p36
    %p39 = scmp.ne.s32.totalorder %s22, %s38
    %p40 = scmp.eq.s32.totalorder %s14, 0
    %p41 = por %p39, %p40
    %s43 = sadd.s32 %s42, 1
    %p46 = scmp.eq.s32.totalorder %s8, 1
    %p47 = scmp.ne.s32.totalorder %s42, %s44
    %p48 = scmp.eq.s32.totalorder %s8, 0
    %p49 = por %p47, %p48
    %p50 = scmp.ne.s32.totalorder %s42, %s44
    %p51 = scmp.eq.s32.totalorder %s13, 1
    %p52 = por %p50, %p51
    %p53 = scmp.ne.s32.totalorder %s44, %s45
    %p54 = scmp.eq.s32.totalorder %s13, 0
    %p55 = por %p53, %p54
    %p56 = scmp.ne.s32.totalorder %s44, %s45
    %p57 = scmp.eq.s32.totalorder %s14, 1
    %p58 = por %p56, %p57
    %p60 = scmp.ne.s32.totalorder %s45, %s59
    %p61 = scmp.eq.s32.totalorder %s14, 0
    %p62 = por %p60, %p61
    %s63 = ssub.s32 %s8, %s15
    %p64 = scmp.eq.s32.totalorder %s63, 0
    %s66 = sadd.s32 %s65, 1
    %s67 = scalar_select %p64, %s65, %s66
    %p70 = pneg %p64
    %p71 = scmp.eq.s32.totalorder %s8, 1
    %p72 = por %p70, %p71
    %p73 = scmp.ne.s32.totalorder %s65, %s68
    %p74 = scmp.eq.s32.totalorder %s8, 0
    %p75 = por %p73, %p74
    %p76 = scmp.ne.s32.totalorder %s65, %s68
    %p77 = scmp.eq.s32.totalorder %s13, 1
    %p78 = por %p76, %p77
    %p79 = scmp.ne.s32.totalorder %s68, %s69
    %p80 = scmp.eq.s32.totalorder %s13, 0
    %p81 = por %p79, %p80
    %p82 = scmp.ne.s32.totalorder %s68, %s69
    %p83 = scmp.eq.s32.totalorder %s14, 1
    %p84 = por %p82, %p83
    %p86 = scmp.ne.s32.totalorder %s69, %s85
    %p87 = scmp.eq.s32.totalorder %s14, 0
    %p88 = por %p86, %p87
    %p89 = scmp.le.s32.totalorder 1, %s8
    %p90 = scmp.lt.s32.totalorder %s8, 3
    %p91 = pnand %p89, %p90
    %p92 = pneg %p91
    // Predicated region
    $region9: #{pitch_shift_forward.2} parent=5 // pred_check
      _
    $region10: #{pitch_shift_forward.2} parent=5 // pred_check_branch
      %94 = sbr.rel (%p91) target = $region12
    $region11: #{pitch_shift_forward.2} parent=5 // pred_region
      %s95 = ssub.s32 %s8, 1
      // Predicated region
      $region13: #{pitch_shift_forward.2} parent=11 // pred_check
        %p96 = pneg %p55
      $region14: #{pitch_shift_forward.2} parent=11 // pred_check_branch
        %98 = sbr.rel (%p96) target = $region16
      $region15: #{pitch_shift_forward.2} parent=11 // pred_region
        _
      $region16: #{pitch_shift_forward.2} parent=11 // pred_fallthru
        _
    $region12: #{pitch_shift_forward.2} parent=5 // pred_fallthru
      _
    %p99 = scmp.lt.s32.totalorder %s8, 2
    // Predicated region
    $region17: #{pitch_shift_forward.2} parent=5 // pred_check
      %p100 = pneg %p99
    $region18: #{pitch_shift_forward.2} parent=5 // pred_check_branch
      %102 = sbr.rel (%p100) target = $region20
    $region19: #{pitch_shift_forward.2} parent=5 // pred_region
      // Predicated region
      $region21: #{pitch_shift_forward.2} parent=19 // pred_check
        %p103 = pneg %p28
      $region22: #{pitch_shift_forward.2} parent=19 // pred_check_branch
        %105 = sbr.rel (%p103) target = $region24
      $region23: #{pitch_shift_forward.2} parent=19 // pred_region
        %s106 = smul.u32 16, %s8
        %p107 = scmp.lt.s32.totalorder %s106, 31
        %s108 = scalar_select %p107, %s106, 31
        %s109 = smul.addr %s108, 8
        %s110 = scalar_lea.vmem %s0, %s109
        %s111 = smul.u32 16, %s8
      $region24: #{pitch_shift_forward.2} parent=19 // pred_fallthru
        _
    $region20: #{pitch_shift_forward.2} parent=5 // pred_fallthru
      _
    %p112 = scmp.le.s32.totalorder 1, %s8
    %p113 = scmp.lt.s32.totalorder %s8, 3
    %p114 = pnand %p112, %p113
    %p115 = pneg %p114
    // Predicated region
    $region25: #{pitch_shift_forward.2} parent=5 // pred_check
      _
    $region26: #{pitch_shift_forward.2} parent=5 // pred_check_branch
      %117 = sbr.rel (%p114) target = $region28
    $region27: #{pitch_shift_forward.2} parent=5 // pred_region
      %s118 = ssub.s32 %s8, 1
      %s119 = smul.u32 16, %s13
      %p120 = scmp.lt.s32.totalorder %s119, 31
      %s121 = scalar_select %p120, %s119, 31
      %s122 = smul.addr %s121, 8
      %s123 = scalar_lea.vmem %s0, %s122
      %p124 = pneg %p34
      %p125 = pneg %p31
      %p126 = pneg %p55
      %p127 = pneg %p52
      %p128 = pneg %p81
      %p129 = pneg %p78
      %s130 = smul.u32 16, %s13
      %p131 = scmp.lt.s32.totalorder %s130, 31
      %s132 = scalar_select %p131, %s130, 31
      %s133 = smul.addr %s132, 2
      %s134 = smul.addr %s133, 8
      %s135 = scalar_lea.vmem %s2, %s134
      %s136 = smul.u32 16, %s13
      %p137 = scmp.lt.s32.totalorder %s136, 31
      %s138 = scalar_select %p137, %s136, 31
      %s139 = smul.addr %s138, 8
      %s140 = scalar_lea.vmem %s0, %s139
      %s141 = smul.u32 16, %s13
      %s142 = smul.u32 16, %s13
      %p143 = scmp.lt.s32.totalorder %s142, 31
      %s144 = scalar_select %p143, %s142, 31
      %s145 = smul.addr %s144, 2
      %s146 = smul.addr %s145, 8
      %s147 = scalar_lea.vmem %s2, %s146
      %s148 = smul.u32 16, %s13
      %v149 = vld [vmem:[%s140] sm:$0xff]
      %v150 = vld [vmem:[%s140 + $0x8] sm:$0xff]
      %v151 = vld [vmem:[%s140 + $0x10] sm:$0xff]
      %v152 = vld [vmem:[%s140 + $0x18] sm:$0xff]
      %v153 = vld [vmem:[%s140 + $0x20] sm:$0xff]
      %v154 = vld [vmem:[%s140 + $0x28] sm:$0xff]
      %v155 = vld [vmem:[%s140 + $0x30] sm:$0xff]
      %v156 = vld [vmem:[%s140 + $0x38] sm:$0xff]
      %v157 = vld [vmem:[%s140 + $0x40] sm:$0xff]
      %v158 = vld [vmem:[%s140 + $0x48] sm:$0xff]
      %v159 = vld [vmem:[%s140 + $0x50] sm:$0xff]
      %v160 = vld [vmem:[%s140 + $0x58] sm:$0xff]
      %v161 = vld [vmem:[%s140 + $0x60] sm:$0xff]
      %v162 = vld [vmem:[%s140 + $0x68] sm:$0xff]
      %v163 = vld [vmem:[%s140 + $0x70] sm:$0xff]
      %v164 = vld [vmem:[%s140 + $0x78] sm:$0xff]
      %v165 = vld [vmem:[%s1] sm:$0xff]
      %v166 = vld [vmem:[%s1 + $0x8] sm:$0xff]
      %v167 = vld [vmem:[%s1 + $0x10] sm:$0xff]
      %v168 = vld [vmem:[%s1 + $0x18] sm:$0xff]
      %v169 = vld [vmem:[%s1 + $0x20] sm:$0xff]
      %v170 = vld [vmem:[%s1 + $0x28] sm:$0xff]
      %v171 = vld [vmem:[%s1 + $0x30] sm:$0xff]
      %v172 = vld [vmem:[%s1 + $0x38] sm:$0xff]
      %v173 = vld [vmem:[%s1 + $0x40] sm:$0xff]
      %v174 = vld [vmem:[%s1 + $0x48] sm:$0xff]
      %v175 = vld [vmem:[%s1 + $0x50] sm:$0xff]
      %v176 = vld [vmem:[%s1 + $0x58] sm:$0xff]
      %v177 = vld [vmem:[%s1 + $0x60] sm:$0xff]
      %v178 = vld [vmem:[%s1 + $0x68] sm:$0xff]
      %v179 = vld [vmem:[%s1 + $0x70] sm:$0xff]
      %v180 = vld [vmem:[%s1 + $0x78] sm:$0xff]
      %v181 = vld [vmem:[%s1 + $0x80] sm:$0xff]
      %v182 = vld [vmem:[%s1 + $0x88] sm:$0xff]
      %v183 = vld [vmem:[%s1 + $0x90] sm:$0xff]
      %v184 = vld [vmem:[%s1 + $0x98] sm:$0xff]
      %v185 = vld [vmem:[%s1 + $0xa0] sm:$0xff]
      %v186 = vld [vmem:[%s1 + $0xa8] sm:$0xff]
      %v187 = vld [vmem:[%s1 + $0xb0] sm:$0xff]
      %v188 = vld [vmem:[%s1 + $0xb8] sm:$0xff]
      %v189 = vld [vmem:[%s1 + $0xc0] sm:$0xff]
      %v190 = vld [vmem:[%s1 + $0xc8] sm:$0xff]
      %v191 = vld [vmem:[%s1 + $0xd0] sm:$0xff]
      %v192 = vld [vmem:[%s1 + $0xd8] sm:$0xff]
      %v193 = vld [vmem:[%s1 + $0xe0] sm:$0xff]
      %v194 = vld [vmem:[%s1 + $0xe8] sm:$0xff]
      %v195 = vld [vmem:[%s1 + $0xf0] sm:$0xff]
      %v196 = vld [vmem:[%s1 + $0xf8] sm:$0xff]
      %197 = vmatpush.msra.mxu0 %v195
      %198 = vmatpush.msra.mxu0 %v193
      %199 = vmatpush.msra.mxu0 %v191
      %200 = vmatpush.msra.mxu0 %v189
      %201 = vmatpush.msra.mxu0 %v187
      %202 = vmatpush.msra.mxu0 %v185
      %203 = vmatpush.msra.mxu0 %v183
      %204 = vmatpush.msra.mxu0 %v181
      %205 = vmatpush.msra.mxu0 %v179
      %206 = vmatpush.msra.mxu0 %v177
      %207 = vmatpush.msra.mxu0 %v175
      %208 = vmatpush.msra.mxu0 %v173
      %209 = vmatpush.msra.mxu0 %v171
      %210 = vmatpush.msra.mxu0 %v169
      %211 = vmatpush.msra.mxu0 %v167
      %212 = vmatpush.msra.mxu0 %v165
      %213 = vmatmul.f32.gmra.mxu0 %v149
      %v214 = vpop.f32.mrf.mxu0
      %v215 = vadd.f32 0.0, %v214
      %216 = vmatmul.f32.gmra.mxu0 %v150
      %v217 = vpop.f32.mrf.mxu0
      %v218 = vadd.f32 0.0, %v217
      %219 = vmatmul.f32.gmra.mxu0 %v151
      %v220 = vpop.f32.mrf.mxu0
      %v221 = vadd.f32 0.0, %v220
      %222 = vmatmul.f32.gmra.mxu0 %v152
      %v223 = vpop.f32.mrf.mxu0
      %v224 = vadd.f32 0.0, %v223
      %225 = vmatmul.f32.gmra.mxu0 %v153
      %v226 = vpop.f32.mrf.mxu0
      %v227 = vadd.f32 0.0, %v226
      %228 = vmatmul.f32.gmra.mxu0 %v154
      %v229 = vpop.f32.mrf.mxu0
      %v230 = vadd.f32 0.0, %v229
      %231 = vmatmul.f32.gmra.mxu0 %v155
      %v232 = vpop.f32.mrf.mxu0
      %v233 = vadd.f32 0.0, %v232
      %234 = vmatmul.f32.gmra.mxu0 %v156
      %v235 = vpop.f32.mrf.mxu0
      %v236 = vadd.f32 0.0, %v235
      %237 = vmatmul.f32.gmra.mxu0 %v157
      %v238 = vpop.f32.mrf.mxu0
      %v239 = vadd.f32 0.0, %v238
      %240 = vmatmul.f32.gmra.mxu0 %v158
      %v241 = vpop.f32.mrf.mxu0
      %v242 = vadd.f32 0.0, %v241
      %243 = vmatmul.f32.gmra.mxu0 %v159
      %v244 = vpop.f32.mrf.mxu0
      %v245 = vadd.f32 0.0, %v244
      %246 = vmatmul.f32.gmra.mxu0 %v160
      %v247 = vpop.f32.mrf.mxu0
      %v248 = vadd.f32 0.0, %v247
      %249 = vmatmul.f32.gmra.mxu0 %v161
      %v250 = vpop.f32.mrf.mxu0
      %v251 = vadd.f32 0.0, %v250
      %252 = vmatmul.f32.gmra.mxu0 %v162
      %v253 = vpop.f32.mrf.mxu0
      %v254 = vadd.f32 0.0, %v253
      %255 = vmatmul.f32.gmra.mxu0 %v163
      %v256 = vpop.f32.mrf.mxu0
      %v257 = vadd.f32 0.0, %v256
      %258 = vmatmul.f32.gmra.mxu0 %v164
      %v259 = vpop.f32.mrf.mxu0
      %v260 = vadd.f32 0.0, %v259
      %261 = vdwg.mxu0
      %262 = vmatpush.msra.mxu0 %v196
      %263 = vmatpush.msra.mxu0 %v194
      %264 = vmatpush.msra.mxu0 %v192
      %265 = vmatpush.msra.mxu0 %v190
      %266 = vmatpush.msra.mxu0 %v188
      %267 = vmatpush.msra.mxu0 %v186
      %268 = vmatpush.msra.mxu0 %v184
      %269 = vmatpush.msra.mxu0 %v182
      %270 = vmatpush.msra.mxu0 %v180
      %271 = vmatpush.msra.mxu0 %v178
      %272 = vmatpush.msra.mxu0 %v176
      %273 = vmatpush.msra.mxu0 %v174
      %274 = vmatpush.msra.mxu0 %v172
      %275 = vmatpush.msra.mxu0 %v170
      %276 = vmatpush.msra.mxu0 %v168
      %277 = vmatpush.msra.mxu0 %v166
      %278 = vmatmul.f32.gmra.mxu0 %v149
      %v279 = vpop.f32.mrf.mxu0
      %v280 = vadd.f32 0.0, %v279
      %281 = vmatmul.f32.gmra.mxu0 %v150
      %v282 = vpop.f32.mrf.mxu0
      %v283 = vadd.f32 0.0, %v282
      %284 = vmatmul.f32.gmra.mxu0 %v151
      %v285 = vpop.f32.mrf.mxu0
      %v286 = vadd.f32 0.0, %v285
      %287 = vmatmul.f32.gmra.mxu0 %v152
      %v288 = vpop.f32.mrf.mxu0
      %v289 = vadd.f32 0.0, %v288
      %290 = vmatmul.f32.gmra.mxu0 %v153
      %v291 = vpop.f32.mrf.mxu0
      %v292 = vadd.f32 0.0, %v291
      %293 = vmatmul.f32.gmra.mxu0 %v154
      %v294 = vpop.f32.mrf.mxu0
      %v295 = vadd.f32 0.0, %v294
      %296 = vmatmul.f32.gmra.mxu0 %v155
      %v297 = vpop.f32.mrf.mxu0
      %v298 = vadd.f32 0.0, %v297
      %299 = vmatmul.f32.gmra.mxu0 %v156
      %v300 = vpop.f32.mrf.mxu0
      %v301 = vadd.f32 0.0, %v300
      %302 = vmatmul.f32.gmra.mxu0 %v157
      %v303 = vpop.f32.mrf.mxu0
      %v304 = vadd.f32 0.0, %v303
      %305 = vmatmul.f32.gmra.mxu0 %v158
      %v306 = vpop.f32.mrf.mxu0
      %v307 = vadd.f32 0.0, %v306
      %308 = vmatmul.f32.gmra.mxu0 %v159
      %v309 = vpop.f32.mrf.mxu0
      %v310 = vadd.f32 0.0, %v309
      %311 = vmatmul.f32.gmra.mxu0 %v160
      %v312 = vpop.f32.mrf.mxu0
      %v313 = vadd.f32 0.0, %v312
      %314 = vmatmul.f32.gmra.mxu0 %v161
      %v315 = vpop.f32.mrf.mxu0
      %v316 = vadd.f32 0.0, %v315
      %317 = vmatmul.f32.gmra.mxu0 %v162
      %v318 = vpop.f32.mrf.mxu0
      %v319 = vadd.f32 0.0, %v318
      %320 = vmatmul.f32.gmra.mxu0 %v163
      %v321 = vpop.f32.mrf.mxu0
      %v322 = vadd.f32 0.0, %v321
      %323 = vmatmul.f32.gmra.mxu0 %v164
      %v324 = vpop.f32.mrf.mxu0
      %v325 = vadd.f32 0.0, %v324
      %326 = vdwg.mxu0
      %327 = vst [vmem:[%s147] sm:$0xff] %v215
      %328 = vst [vmem:[%s147 + $0x8] sm:$0xff] %v280
      %329 = vst [vmem:[%s147 + $0x10] sm:$0xff] %v218
      %330 = vst [vmem:[%s147 + $0x18] sm:$0xff] %v283
      %331 = vst [vmem:[%s147 + $0x20] sm:$0xff] %v221
      %332 = vst [vmem:[%s147 + $0x28] sm:$0xff] %v286
      %333 = vst [vmem:[%s147 + $0x30] sm:$0xff] %v224
      %334 = vst [vmem:[%s147 + $0x38] sm:$0xff] %v289
      %335 = vst [vmem:[%s147 + $0x40] sm:$0xff] %v227
      %336 = vst [vmem:[%s147 + $0x48] sm:$0xff] %v292
      %337 = vst [vmem:[%s147 + $0x50] sm:$0xff] %v230
      %338 = vst [vmem:[%s147 + $0x58] sm:$0xff] %v295
      %339 = vst [vmem:[%s147 + $0x60] sm:$0xff] %v233
      %340 = vst [vmem:[%s147 + $0x68] sm:$0xff] %v298
      %341 = vst [vmem:[%s147 + $0x70] sm:$0xff] %v236
      %342 = vst [vmem:[%s147 + $0x78] sm:$0xff] %v301
      %343 = vst [vmem:[%s147 + $0x80] sm:$0xff] %v239
      %344 = vst [vmem:[%s147 + $0x88] sm:$0xff] %v304
      %345 = vst [vmem:[%s147 + $0x90] sm:$0xff] %v242
      %346 = vst [vmem:[%s147 + $0x98] sm:$0xff] %v307
      %347 = vst [vmem:[%s147 + $0xa0] sm:$0xff] %v245
      %348 = vst [vmem:[%s147 + $0xa8] sm:$0xff] %v310
      %349 = vst [vmem:[%s147 + $0xb0] sm:$0xff] %v248
      %350 = vst [vmem:[%s147 + $0xb8] sm:$0xff] %v313
      %351 = vst [vmem:[%s147 + $0xc0] sm:$0xff] %v251
      %352 = vst [vmem:[%s147 + $0xc8] sm:$0xff] %v316
      %353 = vst [vmem:[%s147 + $0xd0] sm:$0xff] %v254
      %354 = vst [vmem:[%s147 + $0xd8] sm:$0xff] %v319
      %355 = vst [vmem:[%s147 + $0xe0] sm:$0xff] %v257
      %356 = vst [vmem:[%s147 + $0xe8] sm:$0xff] %v322
      %357 = vst [vmem:[%s147 + $0xf0] sm:$0xff] %v260
      %358 = vst [vmem:[%s147 + $0xf8] sm:$0xff] %v325
      %s359 = smul.u32 16, %s13
      %p360 = scmp.lt.s32.totalorder %s359, 31
      %s361 = scalar_select %p360, %s359, 31
      %s362 = smul.addr %s361, 2
      %s363 = smul.addr %s362, 8
      %s364 = scalar_lea.vmem %s2, %s363
      // Predicated region
      $region29: #{pitch_shift_forward.2} parent=27 // pred_check
        %p365 = pneg %p78
      $region30: #{pitch_shift_forward.2} parent=27 // pred_check_branch
        %367 = sbr.rel (%p365) target = $region32
      $region31: #{pitch_shift_forward.2} parent=27 // pred_region
        %s368 = smul.u32 16, %s13
      $region32: #{pitch_shift_forward.2} parent=27 // pred_fallthru
        _
    $region28: #{pitch_shift_forward.2} parent=5 // pred_fallthru
      _
    %p369 = scmp.le.s32.totalorder 2, %s8
    // Predicated region
    $region33: #{pitch_shift_forward.2} parent=5 // pred_check
      %p370 = pneg %p369
    $region34: #{pitch_shift_forward.2} parent=5 // pred_check_branch
      %372 = sbr.rel (%p370) target = $region36
    $region35: #{pitch_shift_forward.2} parent=5 // pred_region
      %s373 = ssub.s32 %s8, 2
      // Predicated region
      $region37: #{pitch_shift_forward.2} parent=35 // pred_check
        %p374 = pneg %p84
      $region38: #{pitch_shift_forward.2} parent=35 // pred_check_branch
        %376 = sbr.rel (%p374) target = $region40
      $region39: #{pitch_shift_forward.2} parent=35 // pred_region
        %s377 = smul.u32 16, %s14
        %p378 = scmp.lt.s32.totalorder %s377, 31
        %s379 = scalar_select %p378, %s377, 31
        %s380 = smul.addr %s379, 2
        %s381 = smul.addr %s380, 8
        %s382 = scalar_lea.vmem %s2, %s381
      $region40: #{pitch_shift_forward.2} parent=35 // pred_fallthru
        _
    $region36: #{pitch_shift_forward.2} parent=5 // pred_fallthru
      _
  $region6: #{pitch_shift_forward.2} parent=0 // loop_footer
    %s12 = sadd.s32 1, %s8
  $region7: #{pitch_shift_forward.2} parent=0 // loop_footer_branch
    %7 = sbr.rel target = $region3
  $region8: #{pitch_shift_forward.2} parent=0 // loop_exit
    _

// kernel: pitch_shift_forward.3
$region0: #{pitch_shift_forward.3}
  #allocation0 [shape = 'u32[]', space=smem, size = 0x4, offset = 0x4, fixed_abs, tag = 'smem constant byte address 0x4 - core index']
  #allocation1 [shape = 'u32[72,128]{1,0:T(1,128)}', space=vmem, size = 0x9000, scoped, tag = 'internal scratch']
  %s0 = inlined_call_operand.vmem [shape: f32[256,256], index: 0, kind: input, shape index: {}]
  %s1 = inlined_call_operand.vmem [shape: f32[256,128], index: 1, kind: input, shape index: {}]
  %s2 = inlined_call_operand.vmem [shape: f32[256,128], index: 2, kind: output, shape index: {}]
  %s3 = sld [smem:[#allocation0]]
  $region41: #{pitch_shift_forward.3} parent=0
    _
  %s5 = ssub.s32 1, %s3
  %s6 = scalar_select 0, %s5, %s3
  loop: start=0, step=1, limit=4
  $region2: #{pitch_shift_forward.3} parent=0 // loop_pre_header
    _
  $region3: #{pitch_shift_forward.3} parent=0 // loop_header
    %s8 = sphi 0, %s12
    %p9 = scmp.ge.s32.totalorder %s8, 4
    %s18 = sphi 0, %s20
    %s21 = sphi 0, %s18
    %s22 = sphi 0, %s21
    %s38 = sphi 0, %s22
    %s42 = sphi 0, %s42
    %s44 = sphi 0, %s42
    %s45 = sphi 0, %s44
    %s59 = sphi 0, %s45
    %s65 = sphi 0, %s67
    %s68 = sphi 0, %s65
    %s69 = sphi 0, %s68
    %s85 = sphi 0, %s69
  $region4: #{pitch_shift_forward.3} parent=0 // loop_header_branch
    %11 = sbr.rel (%p9) target = $region8
  $region5: #{pitch_shift_forward.3} parent=0 // loop_body
    %s13 = ssub.s32 %s8, 1
    %s14 = ssub.s32 %s8, 2
    %s15 = sadd.s32 %s8, 1
    %s16 = ssub.s32 %s8, %s15
    %p17 = scmp.eq.s32.totalorder %s16, 0
    %s19 = sadd.s32 %s18, 1
    %s20 = scalar_select %p17, %s18, %s19
    %p23 = pneg %p17
    %p24 = scmp.eq.s32.totalorder %s8, 1
    %p25 = por %p23, %p24
    %p26 = scmp.ne.s32.totalorder %s18, %s21
    %p27 = scmp.eq.s32.totalorder %s8, 0
    %p28 = por %p26, %p27
    %p29 = scmp.ne.s32.totalorder %s18, %s21
    %p30 = scmp.eq.s32.totalorder %s13, 1
    %p31 = por %p29, %p30
    %p32 = scmp.ne.s32.totalorder %s21, %s22
    %p33 = scmp.eq.s32.totalorder %s13, 0
    %p34 = por %p32, %p33
    %p35 = scmp.ne.s32.totalorder %s21, %s22
    %p36 = scmp.eq.s32.totalorder %s14, 1
    %p37 = por %p35, %p36
    %p39 = scmp.ne.s32.totalorder %s22, %s38
    %p40 = scmp.eq.s32.totalorder %s14, 0
    %p41 = por %p39, %p40
    %s43 = sadd.s32 %s42, 1
    %p46 = scmp.eq.s32.totalorder %s8, 1
    %p47 = scmp.ne.s32.totalorder %s42, %s44
    %p48 = scmp.eq.s32.totalorder %s8, 0
    %p49 = por %p47, %p48
    %p50 = scmp.ne.s32.totalorder %s42, %s44
    %p51 = scmp.eq.s32.totalorder %s13, 1
    %p52 = por %p50, %p51
    %p53 = scmp.ne.s32.totalorder %s44, %s45
    %p54 = scmp.eq.s32.totalorder %s13, 0
    %p55 = por %p53, %p54
    %p56 = scmp.ne.s32.totalorder %s44, %s45
    %p57 = scmp.eq.s32.totalorder %s14, 1
    %p58 = por %p56, %p57
    %p60 = scmp.ne.s32.totalorder %s45, %s59
    %p61 = scmp.eq.s32.totalorder %s14, 0
    %p62 = por %p60, %p61
    %s63 = ssub.s32 %s8, %s15
    %p64 = scmp.eq.s32.totalorder %s63, 0
    %s66 = sadd.s32 %s65, 1
    %s67 = scalar_select %p64, %s65, %s66
    %p70 = pneg %p64
    %p71 = scmp.eq.s32.totalorder %s8, 1
    %p72 = por %p70, %p71
    %p73 = scmp.ne.s32.totalorder %s65, %s68
    %p74 = scmp.eq.s32.totalorder %s8, 0
    %p75 = por %p73, %p74
    %p76 = scmp.ne.s32.totalorder %s65, %s68
    %p77 = scmp.eq.s32.totalorder %s13, 1
    %p78 = por %p76, %p77
    %p79 = scmp.ne.s32.totalorder %s68, %s69
    %p80 = scmp.eq.s32.totalorder %s13, 0
    %p81 = por %p79, %p80
    %p82 = scmp.ne.s32.totalorder %s68, %s69
    %p83 = scmp.eq.s32.totalorder %s14, 1
    %p84 = por %p82, %p83
    %p86 = scmp.ne.s32.totalorder %s69, %s85
    %p87 = scmp.eq.s32.totalorder %s14, 0
    %p88 = por %p86, %p87
    %p89 = scmp.le.s32.totalorder 1, %s8
    %p90 = scmp.lt.s32.totalorder %s8, 3
    %p91 = pnand %p89, %p90
    %p92 = pneg %p91
    // Predicated region
    $region9: #{pitch_shift_forward.3} parent=5 // pred_check
      _
    $region10: #{pitch_shift_forward.3} parent=5 // pred_check_branch
      %94 = sbr.rel (%p91) target = $region12
    $region11: #{pitch_shift_forward.3} parent=5 // pred_region
      %s95 = ssub.s32 %s8, 1
      // Predicated region
      $region13: #{pitch_shift_forward.3} parent=11 // pred_check
        %p96 = pneg %p55
      $region14: #{pitch_shift_forward.3} parent=11 // pred_check_branch
        %98 = sbr.rel (%p96) target = $region16
      $region15: #{pitch_shift_forward.3} parent=11 // pred_region
        _
      $region16: #{pitch_shift_forward.3} parent=11 // pred_fallthru
        _
    $region12: #{pitch_shift_forward.3} parent=5 // pred_fallthru
      _
    %p99 = scmp.lt.s32.totalorder %s8, 2
    // Predicated region
    $region17: #{pitch_shift_forward.3} parent=5 // pred_check
      %p100 = pneg %p99
    $region18: #{pitch_shift_forward.3} parent=5 // pred_check_branch
      %102 = sbr.rel (%p100) target = $region20
    $region19: #{pitch_shift_forward.3} parent=5 // pred_region
      // Predicated region
      $region21: #{pitch_shift_forward.3} parent=19 // pred_check
        %p103 = pneg %p28
      $region22: #{pitch_shift_forward.3} parent=19 // pred_check_branch
        %105 = sbr.rel (%p103) target = $region24
      $region23: #{pitch_shift_forward.3} parent=19 // pred_region
        %s106 = smul.u32 16, %s8
        %p107 = scmp.lt.s32.totalorder %s106, 31
        %s108 = scalar_select %p107, %s106, 31
        %s109 = smul.addr %s108, 2
        %s110 = smul.addr %s109, 8
        %s111 = scalar_lea.vmem %s0, %s110
        %s112 = smul.u32 16, %s8
      $region24: #{pitch_shift_forward.3} parent=19 // pred_fallthru
        _
    $region20: #{pitch_shift_forward.3} parent=5 // pred_fallthru
      _
    %p113 = scmp.le.s32.totalorder 1, %s8
    %p114 = scmp.lt.s32.totalorder %s8, 3
    %p115 = pnand %p113, %p114
    %p116 = pneg %p115
    // Predicated region
    $region25: #{pitch_shift_forward.3} parent=5 // pred_check
      _
    $region26: #{pitch_shift_forward.3} parent=5 // pred_check_branch
      %118 = sbr.rel (%p115) target = $region28
    $region27: #{pitch_shift_forward.3} parent=5 // pred_region
      %s119 = ssub.s32 %s8, 1
      %s120 = smul.u32 16, %s13
      %p121 = scmp.lt.s32.totalorder %s120, 31
      %s122 = scalar_select %p121, %s120, 31
      %s123 = smul.addr %s122, 2
      %s124 = smul.addr %s123, 8
      %s125 = scalar_lea.vmem %s0, %s124
      %p126 = pneg %p34
      %p127 = pneg %p31
      %p128 = pneg %p55
      %p129 = pneg %p52
      %p130 = pneg %p81
      %p131 = pneg %p78
      %s132 = smul.u32 16, %s13
      %p133 = scmp.lt.s32.totalorder %s132, 31
      %s134 = scalar_select %p133, %s132, 31
      %s135 = smul.addr %s134, 8
      %s136 = scalar_lea.vmem %s2, %s135
      %s137 = smul.u32 16, %s13
      %p138 = scmp.lt.s32.totalorder %s137, 31
      %s139 = scalar_select %p138, %s137, 31
      %s140 = smul.addr %s139, 2
      %s141 = smul.addr %s140, 8
      %s142 = scalar_lea.vmem %s0, %s141
      %s143 = smul.u32 16, %s13
      %s144 = smul.u32 16, %s13
      %p145 = scmp.lt.s32.totalorder %s144, 31
      %s146 = scalar_select %p145, %s144, 31
      %s147 = smul.addr %s146, 8
      %s148 = scalar_lea.vmem %s2, %s147
      %s149 = smul.u32 16, %s13
      %v150 = vld [vmem:[%s142] sm:$0xff]
      %v151 = vld [vmem:[%s142 + $0x8] sm:$0xff]
      %v152 = vld [vmem:[%s142 + $0x10] sm:$0xff]
      %v153 = vld [vmem:[%s142 + $0x18] sm:$0xff]
      %v154 = vld [vmem:[%s142 + $0x20] sm:$0xff]
      %v155 = vld [vmem:[%s142 + $0x28] sm:$0xff]
      %v156 = vld [vmem:[%s142 + $0x30] sm:$0xff]
      %v157 = vld [vmem:[%s142 + $0x38] sm:$0xff]
      %v158 = vld [vmem:[%s142 + $0x40] sm:$0xff]
      %v159 = vld [vmem:[%s142 + $0x48] sm:$0xff]
      %v160 = vld [vmem:[%s142 + $0x50] sm:$0xff]
      %v161 = vld [vmem:[%s142 + $0x58] sm:$0xff]
      %v162 = vld [vmem:[%s142 + $0x60] sm:$0xff]
      %v163 = vld [vmem:[%s142 + $0x68] sm:$0xff]
      %v164 = vld [vmem:[%s142 + $0x70] sm:$0xff]
      %v165 = vld [vmem:[%s142 + $0x78] sm:$0xff]
      %v166 = vld [vmem:[%s142 + $0x80] sm:$0xff]
      %v167 = vld [vmem:[%s142 + $0x88] sm:$0xff]
      %v168 = vld [vmem:[%s142 + $0x90] sm:$0xff]
      %v169 = vld [vmem:[%s142 + $0x98] sm:$0xff]
      %v170 = vld [vmem:[%s142 + $0xa0] sm:$0xff]
      %v171 = vld [vmem:[%s142 + $0xa8] sm:$0xff]
      %v172 = vld [vmem:[%s142 + $0xb0] sm:$0xff]
      %v173 = vld [vmem:[%s142 + $0xb8] sm:$0xff]
      %v174 = vld [vmem:[%s142 + $0xc0] sm:$0xff]
      %v175 = vld [vmem:[%s142 + $0xc8] sm:$0xff]
      %v176 = vld [vmem:[%s142 + $0xd0] sm:$0xff]
      %v177 = vld [vmem:[%s142 + $0xd8] sm:$0xff]
      %v178 = vld [vmem:[%s142 + $0xe0] sm:$0xff]
      %v179 = vld [vmem:[%s142 + $0xe8] sm:$0xff]
      %v180 = vld [vmem:[%s142 + $0xf0] sm:$0xff]
      %v181 = vld [vmem:[%s142 + $0xf8] sm:$0xff]
      %v182 = vld [vmem:[%s1] sm:$0xff]
      %v183 = vld [vmem:[%s1 + $0x8] sm:$0xff]
      %v184 = vld [vmem:[%s1 + $0x10] sm:$0xff]
      %v185 = vld [vmem:[%s1 + $0x18] sm:$0xff]
      %v186 = vld [vmem:[%s1 + $0x20] sm:$0xff]
      %v187 = vld [vmem:[%s1 + $0x28] sm:$0xff]
      %v188 = vld [vmem:[%s1 + $0x30] sm:$0xff]
      %v189 = vld [vmem:[%s1 + $0x38] sm:$0xff]
      %v190 = vld [vmem:[%s1 + $0x40] sm:$0xff]
      %v191 = vld [vmem:[%s1 + $0x48] sm:$0xff]
      %v192 = vld [vmem:[%s1 + $0x50] sm:$0xff]
      %v193 = vld [vmem:[%s1 + $0x58] sm:$0xff]
      %v194 = vld [vmem:[%s1 + $0x60] sm:$0xff]
      %v195 = vld [vmem:[%s1 + $0x68] sm:$0xff]
      %v196 = vld [vmem:[%s1 + $0x70] sm:$0xff]
      %v197 = vld [vmem:[%s1 + $0x78] sm:$0xff]
      %v198 = vld [vmem:[%s1 + $0x80] sm:$0xff]
      %v199 = vld [vmem:[%s1 + $0x88] sm:$0xff]
      %v200 = vld [vmem:[%s1 + $0x90] sm:$0xff]
      %v201 = vld [vmem:[%s1 + $0x98] sm:$0xff]
      %v202 = vld [vmem:[%s1 + $0xa0] sm:$0xff]
      %v203 = vld [vmem:[%s1 + $0xa8] sm:$0xff]
      %v204 = vld [vmem:[%s1 + $0xb0] sm:$0xff]
      %v205 = vld [vmem:[%s1 + $0xb8] sm:$0xff]
      %v206 = vld [vmem:[%s1 + $0xc0] sm:$0xff]
      %v207 = vld [vmem:[%s1 + $0xc8] sm:$0xff]
      %v208 = vld [vmem:[%s1 + $0xd0] sm:$0xff]
      %v209 = vld [vmem:[%s1 + $0xd8] sm:$0xff]
      %v210 = vld [vmem:[%s1 + $0xe0] sm:$0xff]
      %v211 = vld [vmem:[%s1 + $0xe8] sm:$0xff]
      %v212 = vld [vmem:[%s1 + $0xf0] sm:$0xff]
      %v213 = vld [vmem:[%s1 + $0xf8] sm:$0xff]
      %214 = vmatpush.msra.mxu0 %v197
      %215 = vmatpush.msra.mxu0 %v196
      %216 = vmatpush.msra.mxu0 %v195
      %217 = vmatpush.msra.mxu0 %v194
      %218 = vmatpush.msra.mxu0 %v193
      %219 = vmatpush.msra.mxu0 %v192
      %220 = vmatpush.msra.mxu0 %v191
      %221 = vmatpush.msra.mxu0 %v190
      %222 = vmatpush.msra.mxu0 %v189
      %223 = vmatpush.msra.mxu0 %v188
      %224 = vmatpush.msra.mxu0 %v187
      %225 = vmatpush.msra.mxu0 %v186
      %226 = vmatpush.msra.mxu0 %v185
      %227 = vmatpush.msra.mxu0 %v184
      %228 = vmatpush.msra.mxu0 %v183
      %229 = vmatpush.msra.mxu0 %v182
      %230 = vmatmul.f32.gmra.mxu0 %v150
      %v231 = vpop.f32.mrf.mxu0
      %v232 = vadd.f32 0.0, %v231
      %233 = vmatmul.f32.gmra.mxu0 %v152
      %v234 = vpop.f32.mrf.mxu0
      %v235 = vadd.f32 0.0, %v234
      %236 = vmatmul.f32.gmra.mxu0 %v154
      %v237 = vpop.f32.mrf.mxu0
      %v238 = vadd.f32 0.0, %v237
      %239 = vmatmul.f32.gmra.mxu0 %v156
      %v240 = vpop.f32.mrf.mxu0
      %v241 = vadd.f32 0.0, %v240
      %242 = vmatmul.f32.gmra.mxu0 %v158
      %v243 = vpop.f32.mrf.mxu0
      %v244 = vadd.f32 0.0, %v243
      %245 = vmatmul.f32.gmra.mxu0 %v160
      %v246 = vpop.f32.mrf.mxu0
      %v247 = vadd.f32 0.0, %v246
      %248 = vmatmul.f32.gmra.mxu0 %v162
      %v249 = vpop.f32.mrf.mxu0
      %v250 = vadd.f32 0.0, %v249
      %251 = vmatmul.f32.gmra.mxu0 %v164
      %v252 = vpop.f32.mrf.mxu0
      %v253 = vadd.f32 0.0, %v252
      %254 = vmatmul.f32.gmra.mxu0 %v166
      %v255 = vpop.f32.mrf.mxu0
      %v256 = vadd.f32 0.0, %v255
      %257 = vmatmul.f32.gmra.mxu0 %v168
      %v258 = vpop.f32.mrf.mxu0
      %v259 = vadd.f32 0.0, %v258
      %260 = vmatmul.f32.gmra.mxu0 %v170
      %v261 = vpop.f32.mrf.mxu0
      %v262 = vadd.f32 0.0, %v261
      %263 = vmatmul.f32.gmra.mxu0 %v172
      %v264 = vpop.f32.mrf.mxu0
      %v265 = vadd.f32 0.0, %v264
      %266 = vmatmul.f32.gmra.mxu0 %v174
      %v267 = vpop.f32.mrf.mxu0
      %v268 = vadd.f32 0.0, %v267
      %269 = vmatmul.f32.gmra.mxu0 %v176
      %v270 = vpop.f32.mrf.mxu0
      %v271 = vadd.f32 0.0, %v270
      %272 = vmatmul.f32.gmra.mxu0 %v178
      %v273 = vpop.f32.mrf.mxu0
      %v274 = vadd.f32 0.0, %v273
      %275 = vmatmul.f32.gmra.mxu0 %v180
      %v276 = vpop.f32.mrf.mxu0
      %v277 = vadd.f32 0.0, %v276
      %278 = vdwg.mxu0
      %279 = vmatpush.msra.mxu0 %v213
      %280 = vmatpush.msra.mxu0 %v212
      %281 = vmatpush.msra.mxu0 %v211
      %282 = vmatpush.msra.mxu0 %v210
      %283 = vmatpush.msra.mxu0 %v209
      %284 = vmatpush.msra.mxu0 %v208
      %285 = vmatpush.msra.mxu0 %v207
      %286 = vmatpush.msra.mxu0 %v206
      %287 = vmatpush.msra.mxu0 %v205
      %288 = vmatpush.msra.mxu0 %v204
      %289 = vmatpush.msra.mxu0 %v203
      %290 = vmatpush.msra.mxu0 %v202
      %291 = vmatpush.msra.mxu0 %v201
      %292 = vmatpush.msra.mxu0 %v200
      %293 = vmatpush.msra.mxu0 %v199
      %294 = vmatpush.msra.mxu0 %v198
      %295 = vmatmul.f32.gmra.mxu0 %v151
      %v296 = vpop.f32.mrf.mxu0
      %v297 = vadd.f32 %v232, %v296
      %298 = vmatmul.f32.gmra.mxu0 %v153
      %v299 = vpop.f32.mrf.mxu0
      %v300 = vadd.f32 %v235, %v299
      %301 = vmatmul.f32.gmra.mxu0 %v155
      %v302 = vpop.f32.mrf.mxu0
      %v303 = vadd.f32 %v238, %v302
      %304 = vmatmul.f32.gmra.mxu0 %v157
      %v305 = vpop.f32.mrf.mxu0
      %v306 = vadd.f32 %v241, %v305
      %307 = vmatmul.f32.gmra.mxu0 %v159
      %v308 = vpop.f32.mrf.mxu0
      %v309 = vadd.f32 %v244, %v308
      %310 = vmatmul.f32.gmra.mxu0 %v161
      %v311 = vpop.f32.mrf.mxu0
      %v312 = vadd.f32 %v247, %v311
      %313 = vmatmul.f32.gmra.mxu0 %v163
      %v314 = vpop.f32.mrf.mxu0
      %v315 = vadd.f32 %v250, %v314
      %316 = vmatmul.f32.gmra.mxu0 %v165
      %v317 = vpop.f32.mrf.mxu0
      %v318 = vadd.f32 %v253, %v317
      %319 = vmatmul.f32.gmra.mxu0 %v167
      %v320 = vpop.f32.mrf.mxu0
      %v321 = vadd.f32 %v256, %v320
      %322 = vmatmul.f32.gmra.mxu0 %v169
      %v323 = vpop.f32.mrf.mxu0
      %v324 = vadd.f32 %v259, %v323
      %325 = vmatmul.f32.gmra.mxu0 %v171
      %v326 = vpop.f32.mrf.mxu0
      %v327 = vadd.f32 %v262, %v326
      %328 = vmatmul.f32.gmra.mxu0 %v173
      %v329 = vpop.f32.mrf.mxu0
      %v330 = vadd.f32 %v265, %v329
      %331 = vmatmul.f32.gmra.mxu0 %v175
      %v332 = vpop.f32.mrf.mxu0
      %v333 = vadd.f32 %v268, %v332
      %334 = vmatmul.f32.gmra.mxu0 %v177
      %v335 = vpop.f32.mrf.mxu0
      %v336 = vadd.f32 %v271, %v335
      %337 = vmatmul.f32.gmra.mxu0 %v179
      %v338 = vpop.f32.mrf.mxu0
      %v339 = vadd.f32 %v274, %v338
      %340 = vmatmul.f32.gmra.mxu0 %v181
      %v341 = vpop.f32.mrf.mxu0
      %v342 = vadd.f32 %v277, %v341
      %343 = vdwg.mxu0
      %344 = vst [vmem:[%s148] sm:$0xff] %v297
      %345 = vst [vmem:[%s148 + $0x8] sm:$0xff] %v300
      %346 = vst [vmem:[%s148 + $0x10] sm:$0xff] %v303
      %347 = vst [vmem:[%s148 + $0x18] sm:$0xff] %v306
      %348 = vst [vmem:[%s148 + $0x20] sm:$0xff] %v309
      %349 = vst [vmem:[%s148 + $0x28] sm:$0xff] %v312
      %350 = vst [vmem:[%s148 + $0x30] sm:$0xff] %v315
      %351 = vst [vmem:[%s148 + $0x38] sm:$0xff] %v318
      %352 = vst [vmem:[%s148 + $0x40] sm:$0xff] %v321
      %353 = vst [vmem:[%s148 + $0x48] sm:$0xff] %v324
      %354 = vst [vmem:[%s148 + $0x50] sm:$0xff] %v327
      %355 = vst [vmem:[%s148 + $0x58] sm:$0xff] %v330
      %356 = vst [vmem:[%s148 + $0x60] sm:$0xff] %v333
      %357 = vst [vmem:[%s148 + $0x68] sm:$0xff] %v336
      %358 = vst [vmem:[%s148 + $0x70] sm:$0xff] %v339
      %359 = vst [vmem:[%s148 + $0x78] sm:$0xff] %v342
      %s360 = smul.u32 16, %s13
      %p361 = scmp.lt.s32.totalorder %s360, 31
      %s362 = scalar_select %p361, %s360, 31
      %s363 = smul.addr %s362, 8
      %s364 = scalar_lea.vmem %s2, %s363
      // Predicated region
      $region29: #{pitch_shift_forward.3} parent=27 // pred_check
        %p365 = pneg %p78
      $region30: #{pitch_shift_forward.3} parent=27 // pred_check_branch
        %367 = sbr.rel (%p365) target = $region32
      $region31: #{pitch_shift_forward.3} parent=27 // pred_region
        %s368 = smul.u32 16, %s13
      $region32: #{pitch_shift_forward.3} parent=27 // pred_fallthru
        _
    $region28: #{pitch_shift_forward.3} parent=5 // pred_fallthru
      _
    %p369 = scmp.le.s32.totalorder 2, %s8
    // Predicated region
    $region33: #{pitch_shift_forward.3} parent=5 // pred_check
      %p370 = pneg %p369
    $region34: #{pitch_shift_forward.3} parent=5 // pred_check_branch
      %372 = sbr.rel (%p370) target = $region36
    $region35: #{pitch_shift_forward.3} parent=5 // pred_region
      %s373 = ssub.s32 %s8, 2
      // Predicated region
      $region37: #{pitch_shift_forward.3} parent=35 // pred_check
        %p374 = pneg %p84
      $region38: #{pitch_shift_forward.3} parent=35 // pred_check_branch
        %376 = sbr.rel (%p374) target = $region40
      $region39: #{pitch_shift_forward.3} parent=35 // pred_region
        %s377 = smul.u32 16, %s14
        %p378 = scmp.lt.s32.totalorder %s377, 31
        %s379 = scalar_select %p378, %s377, 31
        %s380 = smul.addr %s379, 8
        %s381 = scalar_lea.vmem %s2, %s380
      $region40: #{pitch_shift_forward.3} parent=35 // pred_fallthru
        _
    $region36: #{pitch_shift_forward.3} parent=5 // pred_fallthru
      _
  $region6: #{pitch_shift_forward.3} parent=0 // loop_footer
    %s12 = sadd.s32 1, %s8
  $region7: #{pitch_shift_forward.3} parent=0 // loop_footer_branch
    %7 = sbr.rel target = $region3
  $region8: #{pitch_shift_forward.3} parent=0 // loop_exit
    _

</llo_original>
